<compile_context>
chip_gen: v6e
topology: v6e:2x2x1
jax: 0.10.0
libtpu: 0.0.40
codegen_flags: <defaults>
</compile_context>

<pallas_src>
import functools

import jax
import jax.numpy as jnp
from jax.experimental import pallas as pl
from jax.experimental.pallas import tpu as pltpu

LANE = 128      # TPU lane width; hidden (16) and class (4) dims pad to this.
TM_CAP = 4096   # HBM utilization plateaus beyond ~1k rows; cap VMEM growth.
TK_CAP = 4096


# --------------------------------------------------------------------------- #
# Sizing helpers
# --------------------------------------------------------------------------- #
def _round_up(x, m):
    return ((x + m - 1) // m) * m


def _vmem_limit_bytes():
    # Per-TensorCore scoped-VMEM limit.  Fallback is the v7x per-TC size
    # (64 MiB, the most restrictive generation).
    cap = 64 * 1024 * 1024
    try:
        reported = getattr(pltpu.get_tpu_info(), "vmem_capacity_bytes", None)
        if reported:
            cap = int(reported)
    except Exception:
        pass
    return int(min(0.85 * cap, 110 * 1024 * 1024))


def _choose_tiles(n, vmem_limit, out_bytes=4):
    """Row tile tm and reduction tile tk for the aggregation kernels.

    Honest per-iteration VMEM accounting: double-buffered A tile, double-
    buffered feature tile, f32 accumulator scratch, f32 epilogue temporaries,
    double-buffered output block, resident W2 / bias blocks.
    """
    budget = int(0.75 * vmem_limit)

    # Reduction (K) tile.  Keep the transformed features fully resident when
    # cheap; otherwise stream K tiles that divide N exactly (a partially
    # out-of-bounds K block would accumulate garbage, so only exact divisors
    # are safe).  TODO(synk): masked K remainder for N not a multiple of 128.
    feats_resident = 2 * n * LANE * 2            # 2 pipeline bufs x bf16 slab
    if n % LANE != 0 or feats_resident <= budget // 3:
        tk = n
    else:
        tk = min(TK_CAP, (n // LANE) * LANE)
        while tk > LANE and n % tk != 0:
            tk -= LANE

    fixed = (2 * tk * LANE * 2          # feature tile, 2 bufs, bf16
             + 2 * LANE * LANE * 2      # resident W2 block, 2 bufs, bf16
             + 4 * LANE * 4)            # bias blocks
    per_row = (2 * tk * 2               # A row tile, 2 bufs, bf16
               + LANE * 4               # f32 accumulator scratch
               + LANE * 4               # f32 epilogue temporaries (estimate)
               + 2 * LANE * out_bytes)  # output block, 2 bufs
    tm = (budget - fixed) // per_row
    tm = max(LANE, (tm // LANE) * LANE)   # 128-aligned (full vregs on all gens)
    tm = min(tm, TM_CAP, n)
    return int(tm), int(tk)


# --------------------------------------------------------------------------- #
# Kernels
# --------------------------------------------------------------------------- #
def _layer1_kernel(a_ref, xw_ref, b1_ref, w2_ref, o_ref, acc_ref):
    """acc += A_tile @ XW1_tile; epilogue: HW2 = relu(acc + b1) @ W2 (fused)."""
    k = pl.program_id(1)

    @pl.when(k == 0)
    def _():
        acc_ref[...] = jnp.zeros_like(acc_ref)

    acc_ref[...] += jnp.dot(a_ref[...], xw_ref[...],
                            preferred_element_type=jnp.float32)

    @pl.when(k == pl.num_programs(1) - 1)
    def _():
        h = jnp.maximum(acc_ref[...] + b1_ref[...], 0.0)
        # TODO(synk): training-mode dropout (pltpu.prng_*); eval path only.
        hw2 = jnp.dot(h.astype(w2_ref.dtype), w2_ref[...],
                      preferred_element_type=jnp.float32)
        o_ref[...] = hw2.astype(o_ref.dtype)


def _layer2_kernel(a_ref, hw2_ref, b2_ref, o_ref, acc_ref, *, num_classes):
    """acc += A_tile @ HW2_tile; epilogue: masked log_softmax(acc + b2)."""
    k = pl.program_id(1)

    @pl.when(k == 0)
    def _():
        acc_ref[...] = jnp.zeros_like(acc_ref)

    acc_ref[...] += jnp.dot(a_ref[...], hw2_ref[...],
                            preferred_element_type=jnp.float32)

    @pl.when(k == pl.num_programs(1) - 1)
    def _():
        h = acc_ref[...] + b2_ref[...]
        lane = jax.lax.broadcasted_iota(jnp.int32, h.shape, 1)
        valid = lane < num_classes          # padded W2/b2 lanes are exactly 0
        m = jnp.max(jnp.where(valid, h, -jnp.inf), axis=1, keepdims=True)
        z = h - m
        se = jnp.sum(jnp.where(valid, jnp.exp(z), 0.0), axis=1, keepdims=True)
        o_ref[...] = jnp.where(valid, z - jnp.log(se), 0.0).astype(o_ref.dtype)


# --------------------------------------------------------------------------- #
# Pallas call wrapper
# --------------------------------------------------------------------------- #
def _run_aggregation(kernel, a, feats, consts, out_width, out_dtype,
                     tm, tk, vmem_limit):
    """Row- and K-tiled A_tile @ feats fused with the layer epilogue."""
    n = a.shape[0]
    fw = feats.shape[1]
    in_specs = [
        pl.BlockSpec((tm, tk), lambda i, k: (i, k)),    # streamed A tile
        pl.BlockSpec((tk, fw), lambda i, k: (k, 0)),    # streamed/resident feats
    ]
    in_specs += [pl.BlockSpec(c.shape, lambda i, k: (0, 0)) for c in consts]
    return pl.pallas_call(
        kernel,
        out_shape=jax.ShapeDtypeStruct((n, out_width), out_dtype),
        grid=(pl.cdiv(n, tm), pl.cdiv(n, tk)),
        in_specs=in_specs,
        out_specs=pl.BlockSpec((tm, out_width), lambda i, k: (i, 0)),
        scratch_shapes=[pltpu.VMEM((tm, fw), jnp.float32)],
        compiler_params=pltpu.CompilerParams(
            dimension_semantics=("parallel", "arbitrary"),
            vmem_limit_bytes=vmem_limit),
    )(a, feats, *consts)


def gcn_forward(a_hat, x, w1, b1, w2, b2):
    """log_softmax(A_hat @ (relu(A_hat @ (X @ W1) + b1) @ W2) + b2), eval mode."""
    n, f_in = x.shape
    hidden = w1.shape[1]
    num_classes = w2.shape[1]
    assert a_hat.shape == (n, n)

    # A_hat is streamed as-is; it is already built in bf16 (no cast pass).
    a = a_hat if a_hat.dtype == jnp.bfloat16 else a_hat.astype(jnp.bfloat16)
    # TODO(synk): fp8 (v7x) / int8 (v5e/v6e) compression of A_hat.

    # Layer-1 feature transform is O(N*f_in*hidden) and lane-sparse (K=8):
    # plain XLA, not a Pallas pass.
    xw1 = jnp.dot(x.astype(jnp.float32), w1.astype(jnp.float32))   # (n, hidden)

    # Zero-pad hidden/class dims to full 128-lane slabs (lane-dense stores;
    # the zero padding is what keeps the masked log_softmax epilogue correct).
    hp = _round_up(hidden, LANE)
    cp = _round_up(num_classes, LANE)
    xw1p = jnp.zeros((n, hp), jnp.bfloat16).at[:, :hidden].set(
        xw1.astype(jnp.bfloat16))
    b1p = jnp.zeros((1, hp), jnp.float32).at[:, :hidden].set(
        b1.reshape(1, hidden).astype(jnp.float32))
    w2p = jnp.zeros((hp, cp), jnp.bfloat16).at[:hidden, :num_classes].set(
        w2.astype(jnp.bfloat16))
    b2p = jnp.zeros((1, cp), jnp.float32).at[:, :num_classes].set(
        b2.reshape(1, num_classes).astype(jnp.float32))

    vmem_limit = _vmem_limit_bytes()
    tm, tk = _choose_tiles(n, vmem_limit, out_bytes=4)

    # Pass 1 (fused): HW2 = relu(A_hat @ XW1 + b1) @ W2   -- one pallas_call.
    hw2 = _run_aggregation(_layer1_kernel, a, xw1p, [b1p, w2p],
                           cp, jnp.bfloat16, tm, tk, vmem_limit)

    # F.dropout(x, training=False) is the identity in eval mode.

    # Pass 2: log_softmax(A_hat @ HW2 + b2) over the real classes.
    kernel2 = functools.partial(_layer2_kernel, num_classes=num_classes)
    out_padded = _run_aggregation(kernel2, a, hw2, [b2p],
                                  cp, jnp.float32, tm, tk, vmem_limit)
    return out_padded[:, :num_classes]


# --------------------------------------------------------------------------- #
# Graph preprocessing (plain-JAX glue)
# --------------------------------------------------------------------------- #
def build_normalized_adjacency(edge_index, num_nodes, dtype=jnp.bfloat16):
    """Dense D^-1/2 (A + I) D^-1/2 with torch_geometric GCNConv conventions.

    Duplicate (src, dst) edges accumulate (PyG sums messages over repeated
    edges); a weight-1 self-loop is added only for nodes lacking one
    (add_remaining_self_loops semantics).  The normalization is computed in
    f32 and only the final write is cast, so a single N*N array in the
    streaming dtype ever reaches HBM.
    """
    src, dst = edge_index[0], edge_index[1]
    a = jnp.zeros((num_nodes, num_nodes), jnp.float32)
    a = a.at[dst, src].add(1.0)
    diag = jnp.arange(num_nodes)
    missing = (a[diag, diag] == 0.0).astype(jnp.float32)
    a = a.at[diag, diag].add(missing)
    deg = jnp.sum(a, axis=1)                            # in-degree incl. self-loop
    d_inv_sqrt = jnp.where(deg > 0, jax.lax.rsqrt(deg), 0.0)
    return (d_inv_sqrt[:, None] * a * d_inv_sqrt[None, :]).astype(dtype)


def glorot(key, shape):
    fan_in, fan_out = shape
    limit = jnp.sqrt(6.0 / (fan_in + fan_out))
    return jax.random.uniform(key, shape, jnp.float32, -limit, limit)


if __name__ == "__main__":
    # Small deterministic problem consistent with the module's forward:
    N = 16            # number of graph nodes
    F_IN = 8          # no_features
    HIDDEN = 16       # GCNConv hidden width (fixed to 16 in the module)
    C = 4             # no_classes
    E = 40            # number of directed edges

    key = jax.random.PRNGKey(0)
    k_x, k_e, k_w1, k_w2 = jax.random.split(key, 4)

    # data.x and data.edge_index
    x = jax.random.normal(k_x, (N, F_IN), jnp.float32)
    edge_index = jax.random.randint(k_e, (2, E), 0, N, jnp.int32)

    # Parameters: GCNConv(F_IN, 16) and GCNConv(16, C); glorot weights, zero bias.
    w1 = glorot(k_w1, (F_IN, HIDDEN))
    b1 = jnp.zeros((HIDDEN,), jnp.float32)
    w2 = glorot(k_w2, (HIDDEN, C))
    b2 = jnp.zeros((C,), jnp.float32)

    a_hat = build_normalized_adjacency(edge_index, N)   # bf16 directly

    out = gcn_forward(a_hat, x, w1, b1, w2, b2)
    out = jax.block_until_ready(out)

    # Sanity: shape, normalized rows, agreement with an f32 JAX reference that
    # uses the same (bf16-quantized) adjacency.
    assert out.shape == (N, C)
    row_sums = jnp.sum(jnp.exp(out), axis=1)
    assert bool(jnp.all(jnp.abs(row_sums - 1.0) < 1e-3))

    a_f32 = a_hat.astype(jnp.float32)
    h_ref = jnp.maximum(a_f32 @ (x @ w1) + b1, 0.0)
    ref = jax.nn.log_softmax(a_f32 @ (h_ref @ w2) + b2, axis=1)
    assert bool(jnp.all(jnp.abs(out - ref) < 1e-1))   # bf16-streaming tolerance

    print("KERNEL_OK")
</pallas_src>

<mosaic_0001>
module attributes {stable_mosaic.version = 11 : i64} {
  func.func @_layer1_kernel(%arg0: i32, %arg1: i32, %arg2: memref<16x16xbf16, #tpu.memory_space<vmem>>, %arg3: memref<16x128xbf16, #tpu.memory_space<vmem>>, %arg4: memref<1x128xf32, #tpu.memory_space<vmem>>, %arg5: memref<128x128xbf16, #tpu.memory_space<vmem>>, %arg6: memref<16x128xbf16, #tpu.memory_space<vmem>>, %arg7: memref<16x128xf32, #tpu.memory_space<vmem>>) attributes {dimension_semantics = [#tpu.dimension_semantics<parallel>, #tpu.dimension_semantics<arbitrary>], iteration_bounds = array<i64: 1, 1>, scalar_prefetch = 0 : i64, scratch_operands = 1 : i64, tpu.core_type = #tpu.core_type<tc>, window_params = [{transform_indices = @transform_0, window_bounds = array<i64: 16, 16>}, {transform_indices = @transform_1, window_bounds = array<i64: 16, 128>}, {pipeline_mode = #tpu.pipeline_mode<synchronous>, transform_indices = @transform_2, window_bounds = array<i64: 1, 128>}, {pipeline_mode = #tpu.pipeline_mode<synchronous>, transform_indices = @transform_3, window_bounds = array<i64: 128, 128>}, {transform_indices = @transform_4, window_bounds = array<i64: 16, 128>}]} {
    %c0_i32 = arith.constant 0 : i32
    %0 = arith.cmpi eq, %arg1, %c0_i32 : i32
    %1 = arith.extui %0 : i1 to i32
    %c0_i32_0 = arith.constant 0 : i32
    %2 = arith.cmpi ne, %1, %c0_i32_0 : i32
    scf.if %2 {
      %cst_10 = arith.constant 0.000000e+00 : f32
      %12 = vector.broadcast %cst_10 : f32 to vector<16x128xf32>
      %c0_11 = arith.constant 0 : index
      %c0_12 = arith.constant 0 : index
      %13 = vector.load %arg7[%c0_11, %c0_12] : memref<16x128xf32, #tpu.memory_space<vmem>>, vector<16x128xf32>
      tpu.vector_store %arg7[%c0_11, %c0_12], %12 {strides = array<i32>} : memref<16x128xf32, #tpu.memory_space<vmem>>, vector<16x128xf32>,
    } else {
    }
    %c0 = arith.constant 0 : index
    %c0_1 = arith.constant 0 : index
    %3 = vector.load %arg7[%c0, %c0_1] : memref<16x128xf32, #tpu.memory_space<vmem>>, vector<16x128xf32>
    %c0_2 = arith.constant 0 : index
    %c0_3 = arith.constant 0 : index
    %4 = vector.load %arg2[%c0_2, %c0_3] : memref<16x16xbf16, #tpu.memory_space<vmem>>, vector<16x16xbf16>
    %c0_4 = arith.constant 0 : index
    %c0_5 = arith.constant 0 : index
    %5 = vector.load %arg3[%c0_4, %c0_5] : memref<16x128xbf16, #tpu.memory_space<vmem>>, vector<16x128xbf16>
    %cst = arith.constant dense<0.000000e+00> : vector<16x128xf32>
    %6 = tpu.matmul %4, %5, %cst {dimension_numbers = #tpu.dot_dimension_numbers<[1], [0], [0], [1], [0, 0, 1, 1], [], []>} : vector<16x16xbf16>, vector<16x128xbf16>, vector<16x128xf32> -> vector<16x128xf32>
    %7 = arith.addf %3, %6 : vector<16x128xf32>
    %c0_6 = arith.constant 0 : index
    %c0_7 = arith.constant 0 : index
    %8 = vector.load %arg7[%c0_6, %c0_7] : memref<16x128xf32, #tpu.memory_space<vmem>>, vector<16x128xf32>
    tpu.vector_store %arg7[%c0_6, %c0_7], %7 {strides = array<i32>} : memref<16x128xf32, #tpu.memory_space<vmem>>, vector<16x128xf32>,
    %c0_i32_8 = arith.constant 0 : i32
    %9 = arith.cmpi eq, %arg1, %c0_i32_8 : i32
    %10 = arith.extui %9 : i1 to i32
    %c0_i32_9 = arith.constant 0 : i32
    %11 = arith.cmpi ne, %10, %c0_i32_9 : i32
    scf.if %11 {
      %c0_10 = arith.constant 0 : index
      %c0_11 = arith.constant 0 : index
      %12 = vector.load %arg7[%c0_10, %c0_11] : memref<16x128xf32, #tpu.memory_space<vmem>>, vector<16x128xf32>
      %c0_12 = arith.constant 0 : index
      %c0_13 = arith.constant 0 : index
      %13 = vector.load %arg4[%c0_12, %c0_13] : memref<1x128xf32, #tpu.memory_space<vmem>>, vector<1x128xf32>
      %14 = vector.broadcast %13 : vector<1x128xf32> to vector<16x128xf32>
      %15 = arith.addf %12, %14 : vector<16x128xf32>
      %cst_14 = arith.constant 0.000000e+00 : f32
      %16 = vector.broadcast %cst_14 : f32 to vector<16x128xf32>
      %17 = arith.maximumf %15, %16 : vector<16x128xf32>
      %18 = arith.truncf %17 : vector<16x128xf32> to vector<16x128xbf16>
      %c0_15 = arith.constant 0 : index
      %c0_16 = arith.constant 0 : index
      %19 = vector.load %arg5[%c0_15, %c0_16] : memref<128x128xbf16, #tpu.memory_space<vmem>>, vector<128x128xbf16>
      %cst_17 = arith.constant dense<0.000000e+00> : vector<16x128xf32>
      %20 = tpu.matmul %18, %19, %cst_17 {dimension_numbers = #tpu.dot_dimension_numbers<[1], [0], [0], [1], [0, 0, 1, 1], [], []>} : vector<16x128xbf16>, vector<128x128xbf16>, vector<16x128xf32> -> vector<16x128xf32>
      %21 = arith.truncf %20 : vector<16x128xf32> to vector<16x128xbf16>
      %c0_18 = arith.constant 0 : index
      %c0_19 = arith.constant 0 : index
      %22 = vector.load %arg6[%c0_18, %c0_19] : memref<16x128xbf16, #tpu.memory_space<vmem>>, vector<16x128xbf16>
      tpu.vector_store %arg6[%c0_18, %c0_19], %21 {strides = array<i32>} : memref<16x128xbf16, #tpu.memory_space<vmem>>, vector<16x128xbf16>,
    } else {
    }
    return
  }
  func.func @transform_0(%arg0: i32, %arg1: i32) -> (i32, i32) {
    %c0_i32 = arith.constant 0 : i32
    return %arg0, %arg1 : i32, i32
  }
  func.func @transform_1(%arg0: i32, %arg1: i32) -> (i32, i32) {
    %c0_i32 = arith.constant 0 : i32
    %c0_i32_0 = arith.constant 0 : i32
    return %arg1, %c0_i32 : i32, i32
  }
  func.func @transform_2(%arg0: i32, %arg1: i32) -> (i32, i32) {
    %c0_i32 = arith.constant 0 : i32
    %c0_i32_0 = arith.constant 0 : i32
    %c0_i32_1 = arith.constant 0 : i32
    return %c0_i32, %c0_i32_0 : i32, i32
  }
  func.func @transform_3(%arg0: i32, %arg1: i32) -> (i32, i32) {
    %c0_i32 = arith.constant 0 : i32
    %c0_i32_0 = arith.constant 0 : i32
    %c0_i32_1 = arith.constant 0 : i32
    return %c0_i32, %c0_i32_0 : i32, i32
  }
  func.func @transform_4(%arg0: i32, %arg1: i32) -> (i32, i32) {
    %c0_i32 = arith.constant 0 : i32
    %c0_i32_0 = arith.constant 0 : i32
    return %arg0, %c0_i32 : i32, i32
  }
}

</mosaic_0001>

<llo_original>
// kernel: tpu_custom_call.1
$region0: #{tpu_custom_call.1}
  #allocation0 [shape = 'u32[]', space=smem, size = 0x4, offset = 0x4, fixed_abs, tag = 'smem constant byte address 0x4 - core index']
  #allocation1 [shape = 'u32[144,128]{1,0:T(1,128)}', space=vmem, size = 0x12000, scoped, tag = 'internal scratch']
  #allocation2 [shape = 'f32[16,128]{1,0:T(8,128)}', space=vmem, size = 0x2000, scoped, tag = 'scratch operand']
  %s0 = inlined_call_operand.hbm [shape: bf16[16,16], index: 0, kind: input, shape index: {}]
  %s1 = inlined_call_operand.hbm [shape: bf16[16,128], index: 1, kind: input, shape index: {}]
  %s2 = inlined_call_operand.vmem [shape: f32[1,128], index: 2, kind: input, shape index: {}]
  %s3 = inlined_call_operand.hbm [shape: bf16[128,128], index: 3, kind: input, shape index: {}]
  %s4 = inlined_call_operand.hbm [shape: bf16[16,128], index: 4, kind: output, shape index: {}]
  %s5 = sld [smem:[#allocation0]]
  $region46: #{tpu_custom_call.1} parent=0
    _
  %s7 = ssub.s32 1, %s5
  %s8 = scalar_select 0, %s7, %s5
  $region1: #{tpu_custom_call.1} parent=0
    #allocation3 [shape = 'u8[4096]{0}', space=vmem, size = 0x1000, scoped, tag = 'input window, operand 0, single buffered']
    #allocation4 [shape = 's32[1]{0}', space=sflag, size = 0x4, scoped, tag = 'scoped memory for tpu_custom_call.1']
    #allocation5 [shape = 's32[1]{0}', space=sflag, size = 0x4, scoped, tag = 'scoped memory for tpu_custom_call.1']
    #allocation6 [shape = 'u8[4096]{0}', space=vmem, size = 0x1000, scoped, tag = 'input window, operand 1, single buffered']
    #allocation7 [shape = 's32[1]{0}', space=sflag, size = 0x4, scoped, tag = 'scoped memory for tpu_custom_call.1']
    #allocation8 [shape = 'u8[32768]{0}', space=vmem, size = 0x8000, scoped, tag = 'input window, operand 3, single buffered']
    #allocation9 [shape = 'u8[4096]{0}', space=vmem, size = 0x1000, scoped, tag = 'output window, operand 0, single buffered']
    %9 = vsyncpa [#allocation4], 0
    %10 = vsyncpa [#allocation7], 0
    %11 = vsyncpa [#allocation5], 0
    // Predicated region
    $region2: #{tpu_custom_call.1} parent=1 // pred_check
      _
    $region3: #{tpu_custom_call.1} parent=1 // pred_check_branch
      %13 = sbr.rel (0) target = $region5
    $region4: #{tpu_custom_call.1} parent=1 // pred_region
      %s15 = ssub.s32 128, 128
      %16 = vsyncadd [#allocation4], %s15
      %s17 = sshll.u32 [#allocation3], 4
      %s18 = int_to_ptr.vmem [resolvable:$true] %s17
      %23 = dma.hbm_to_vmem [thread:$0]  %s0, 128, %s18, [#allocation4], 64, 64, 4
    $region5: #{tpu_custom_call.1} parent=1 // pred_fallthru
      _
    // Predicated region
    $region6: #{tpu_custom_call.1} parent=1 // pred_check
      _
    $region7: #{tpu_custom_call.1} parent=1 // pred_check_branch
      %25 = sbr.rel (0) target = $region9
    $region8: #{tpu_custom_call.1} parent=1 // pred_region
      %s27 = ssub.s32 128, 128
      %28 = vsyncadd [#allocation7], %s27
      %s29 = sshll.u32 [#allocation6], 4
      %s30 = int_to_ptr.vmem [resolvable:$true] %s29
      %35 = dma.hbm_to_vmem [thread:$0]  %s1, 128, %s30, [#allocation7], 64, 64, 4
    $region9: #{tpu_custom_call.1} parent=1 // pred_fallthru
      _
    // Predicated region
    $region10: #{tpu_custom_call.1} parent=1 // pred_check
      _
    $region11: #{tpu_custom_call.1} parent=1 // pred_check_branch
      %37 = sbr.rel (0) target = $region13
    $region12: #{tpu_custom_call.1} parent=1 // pred_region
      _
    $region13: #{tpu_custom_call.1} parent=1 // pred_fallthru
      _
    // Predicated region
    $region14: #{tpu_custom_call.1} parent=1 // pred_check
      _
    $region15: #{tpu_custom_call.1} parent=1 // pred_check_branch
      %39 = sbr.rel (0) target = $region17
    $region16: #{tpu_custom_call.1} parent=1 // pred_region
      %s41 = ssub.s32 1024, 1024
      %42 = vsyncadd [#allocation7], %s41
      %s43 = sshll.u32 [#allocation8], 4
      %s44 = int_to_ptr.vmem [resolvable:$true] %s43
      %49 = dma.hbm_to_vmem [thread:$0]  %s3, 1024, %s44, [#allocation7], 64, 64, 4
    $region17: #{tpu_custom_call.1} parent=1 // pred_fallthru
      _
    // Predicated region
    $region18: #{tpu_custom_call.1} parent=1 // pred_check
      _
    $region19: #{tpu_custom_call.1} parent=1 // pred_check_branch
      %51 = sbr.rel (0) target = $region21
    $region20: #{tpu_custom_call.1} parent=1 // pred_region
      %52 = dma.done [#allocation4], 128
    $region21: #{tpu_custom_call.1} parent=1 // pred_fallthru
      _
    // Predicated region
    $region22: #{tpu_custom_call.1} parent=1 // pred_check
      _
    $region23: #{tpu_custom_call.1} parent=1 // pred_check_branch
      %54 = sbr.rel (0) target = $region25
    $region24: #{tpu_custom_call.1} parent=1 // pred_region
      %55 = dma.done [#allocation7], 128
    $region25: #{tpu_custom_call.1} parent=1 // pred_fallthru
      _
    // Predicated region
    $region26: #{tpu_custom_call.1} parent=1 // pred_check
      _
    $region27: #{tpu_custom_call.1} parent=1 // pred_check_branch
      %57 = sbr.rel (0) target = $region29
    $region28: #{tpu_custom_call.1} parent=1 // pred_region
      %58 = dma.done [#allocation7], 1024
    $region29: #{tpu_custom_call.1} parent=1 // pred_fallthru
      _
    %p60 = scmp.eq.s32.totalorder 0, 0
    // Predicated region
    $region30: #{tpu_custom_call.1} parent=1 // pred_check
      %p61 = pneg %p60
    $region31: #{tpu_custom_call.1} parent=1 // pred_check_branch
      %63 = sbr.rel (%p61) target = $region33
    $region32: #{tpu_custom_call.1} parent=1 // pred_region
      %64 = vst [vmem:[#allocation2] sm:$0xff] 0.0
      %65 = vst [vmem:[#allocation2 + $0x8] sm:$0xff] 0.0
    $region33: #{tpu_custom_call.1} parent=1 // pred_fallthru
      _
    %v66 = vld [vmem:[#allocation2] sm:$0xff]
    %v67 = vld [vmem:[#allocation2 + $0x8] sm:$0xff]
    %v68 = vld [vmem:[#allocation3] sm:$0xf]
    %v69 = vld [vmem:[#allocation3 + $0x4] sm:$0xf]
    %v70 = vld [vmem:[#allocation6] sm:$0xf]
    %v71 = vld [vmem:[#allocation6 + $0x4] sm:$0xf]
    %v74 = vunpack.c.l.b16 %v68
    %v75 = vunpack.c.l.b16 %v69
    %v76 = vpack.c.b16 %v75, %v74
    %v79 = vunpack.c.l.b16 %v70
    %v80 = vunpack.c.l.b16 %v71
    %v81 = vpack.c.b16 %v80, %v79
    %vm83 = vcmask 130048
    %v85 = vsel %vm83, %v76, 0
    %87 = vmatprep.subr.bf16.mxu0 0
    %88 = vmatpush1.bf16.msra.mxu0 0
    %89 = vmatprep.subr.bf16.mxu0 0
    %90 = vmatpush1.bf16.msra.mxu0 0
    %91 = vmatprep.subr.bf16.mxu0 0
    %92 = vmatpush1.bf16.msra.mxu0 0
    %93 = vmatprep.subr.bf16.mxu0 0
    %94 = vmatpush1.bf16.msra.mxu0 0
    %95 = vmatprep.subr.bf16.mxu0 0
    %96 = vmatpush1.bf16.msra.mxu0 0
    %97 = vmatprep.subr.bf16.mxu0 0
    %98 = vmatpush1.bf16.msra.mxu0 0
    %99 = vmatprep.subr.bf16.mxu0 0
    %100 = vmatpush1.bf16.msra.mxu0 0
    %101 = vmatprep.subr.bf16.mxu0 0
    %102 = vmatpush1.bf16.msra.mxu0 %v81
    %103 = vmatprep.subr.bf16.mxu0 0
    %104 = vmatpush2.bf16.msra.mxu0 0
    %105 = vmatprep.subr.bf16.mxu0 0
    %106 = vmatpush2.bf16.msra.mxu0 0
    %107 = vmatprep.subr.bf16.mxu0 0
    %108 = vmatpush2.bf16.msra.mxu0 0
    %109 = vmatprep.subr.bf16.mxu0 0
    %110 = vmatpush2.bf16.msra.mxu0 0
    %111 = vmatprep.subr.bf16.mxu0 0
    %112 = vmatpush2.bf16.msra.mxu0 0
    %113 = vmatprep.subr.bf16.mxu0 0
    %114 = vmatpush2.bf16.msra.mxu0 0
    %115 = vmatprep.subr.bf16.mxu0 0
    %116 = vmatpush2.bf16.msra.mxu0 0
    %117 = vmatprep.subr.bf16.mxu0 0
    %118 = vmatpush2.bf16.msra.mxu0 0
    %119 = vmatprep.mubr.bf16.mxu0 0
    %120 = vmatmul.mubr.bf16.gmra.mxu0 %v85
    %v121 = vpop.f32.mrf.mxu0
    %v122 = vadd.f32 0.0, %v121
    %v123 = vpop.f32.mrf.mxu0
    %v124 = vpop.f32.mrf.mxu0
    %v125 = vadd.f32 0.0, %v124
    %v126 = vpop.f32.mrf.mxu0
    %127 = vdwg.mxu0
    %v128 = vadd.f32 %v66, %v122
    %v129 = vadd.f32 %v67, %v125
    %130 = vst [vmem:[#allocation2] sm:$0xff] %v128
    %131 = vst [vmem:[#allocation2 + $0x8] sm:$0xff] %v129
    // Predicated region
    $region34: #{tpu_custom_call.1} parent=1 // pred_check
      %p132 = pneg %p60
    $region35: #{tpu_custom_call.1} parent=1 // pred_check_branch
      %134 = sbr.rel (%p132) target = $region37
    $region36: #{tpu_custom_call.1} parent=1 // pred_region
      %v135 = vld [vmem:[#allocation2] sm:$0xff]
      %v136 = vld [vmem:[#allocation2 + $0x8] sm:$0xff]
      %v137 = vld [vmem:[%s2] sm:$0x1]
      %v139 = vlaneseq
      %v140 = vshrl.u32 %v139, 7
      %v141 = vsub.s32 0, %v140
      %v142 = vrot.slane %v137, %v141
      %v144 = vadd.f32 %v135, %v142
      %v145 = vadd.f32 %v136, %v142
      %v146 = vmax.f32 %v144, 0.0
      %v147 = vmax.f32 %v145, 0.0
      %v148 = vpack.c.bf16 %v147, %v146
      %v149 = vld [vmem:[#allocation8] sm:$0xf]
      %v150 = vld [vmem:[#allocation8 + $0x4] sm:$0xf]
      %v151 = vld [vmem:[#allocation8 + $0x8] sm:$0xf]
      %v152 = vld [vmem:[#allocation8 + $0xc] sm:$0xf]
      %v153 = vld [vmem:[#allocation8 + $0x10] sm:$0xf]
      %v154 = vld [vmem:[#allocation8 + $0x14] sm:$0xf]
      %v155 = vld [vmem:[#allocation8 + $0x18] sm:$0xf]
      %v156 = vld [vmem:[#allocation8 + $0x1c] sm:$0xf]
      %v157 = vld [vmem:[#allocation8 + $0x20] sm:$0xf]
      %v158 = vld [vmem:[#allocation8 + $0x24] sm:$0xf]
      %v159 = vld [vmem:[#allocation8 + $0x28] sm:$0xf]
      %v160 = vld [vmem:[#allocation8 + $0x2c] sm:$0xf]
      %v161 = vld [vmem:[#allocation8 + $0x30] sm:$0xf]
      %v162 = vld [vmem:[#allocation8 + $0x34] sm:$0xf]
      %v163 = vld [vmem:[#allocation8 + $0x38] sm:$0xf]
      %v164 = vld [vmem:[#allocation8 + $0x3c] sm:$0xf]
      %v181 = vunpack.c.l.b16 %v149
      %v182 = vunpack.c.l.b16 %v150
      %v183 = vunpack.c.l.b16 %v151
      %v184 = vunpack.c.l.b16 %v152
      %v185 = vunpack.c.l.b16 %v153
      %v186 = vunpack.c.l.b16 %v154
      %v187 = vunpack.c.l.b16 %v155
      %v188 = vunpack.c.l.b16 %v156
      %v189 = vunpack.c.l.b16 %v157
      %v190 = vunpack.c.l.b16 %v158
      %v191 = vunpack.c.l.b16 %v159
      %v192 = vunpack.c.l.b16 %v160
      %v193 = vunpack.c.l.b16 %v161
      %v194 = vunpack.c.l.b16 %v162
      %v195 = vunpack.c.l.b16 %v163
      %v196 = vunpack.c.l.b16 %v164
      %v197 = vpack.c.b16 %v182, %v181
      %v198 = vpack.c.b16 %v184, %v183
      %v199 = vpack.c.b16 %v186, %v185
      %v200 = vpack.c.b16 %v188, %v187
      %v201 = vpack.c.b16 %v190, %v189
      %v202 = vpack.c.b16 %v192, %v191
      %v203 = vpack.c.b16 %v194, %v193
      %v204 = vpack.c.b16 %v196, %v195
      %213 = vmatprep.subr.bf16.mxu0 0
      %214 = vmatpush1.bf16.msra.mxu0 %v204
      %215 = vmatprep.subr.bf16.mxu0 0
      %216 = vmatpush1.bf16.msra.mxu0 %v203
      %217 = vmatprep.subr.bf16.mxu0 0
      %218 = vmatpush1.bf16.msra.mxu0 %v202
      %219 = vmatprep.subr.bf16.mxu0 0
      %220 = vmatpush1.bf16.msra.mxu0 %v201
      %221 = vmatprep.subr.bf16.mxu0 0
      %222 = vmatpush1.bf16.msra.mxu0 %v200
      %223 = vmatprep.subr.bf16.mxu0 0
      %224 = vmatpush1.bf16.msra.mxu0 %v199
      %225 = vmatprep.subr.bf16.mxu0 0
      %226 = vmatpush1.bf16.msra.mxu0 %v198
      %227 = vmatprep.subr.bf16.mxu0 0
      %228 = vmatpush1.bf16.msra.mxu0 %v197
      %229 = vmatprep.subr.bf16.mxu0 0
      %230 = vmatpush2.bf16.msra.mxu0 0
      %231 = vmatprep.subr.bf16.mxu0 0
      %232 = vmatpush2.bf16.msra.mxu0 0
      %233 = vmatprep.subr.bf16.mxu0 0
      %234 = vmatpush2.bf16.msra.mxu0 0
      %235 = vmatprep.subr.bf16.mxu0 0
      %236 = vmatpush2.bf16.msra.mxu0 0
      %237 = vmatprep.subr.bf16.mxu0 0
      %238 = vmatpush2.bf16.msra.mxu0 0
      %239 = vmatprep.subr.bf16.mxu0 0
      %240 = vmatpush2.bf16.msra.mxu0 0
      %241 = vmatprep.subr.bf16.mxu0 0
      %242 = vmatpush2.bf16.msra.mxu0 0
      %243 = vmatprep.subr.bf16.mxu0 0
      %244 = vmatpush2.bf16.msra.mxu0 0
      %245 = vmatprep.mubr.bf16.mxu0 0
      %246 = vmatmul.mubr.bf16.gmra.mxu0 %v148
      %v247 = vpop.f32.mrf.mxu0
      %v248 = vadd.f32 0.0, %v247
      %v249 = vpop.f32.mrf.mxu0
      %v250 = vpop.f32.mrf.mxu0
      %v251 = vadd.f32 0.0, %v250
      %v252 = vpop.f32.mrf.mxu0
      %253 = vdwg.mxu0
      %v254 = vpack.c.bf16 %v251, %v248
      %v256 = vunpack.c.l.b16 %v254
      %v257 = vunpack.c.h.b16 %v254
      %v258 = vpack.c.b16 %v256, %v256
      %v259 = vpack.c.b16 %v257, %v257
      %262 = vst [vmem:[#allocation9] sm:$0xf] %v258
      %263 = vst [vmem:[#allocation9 + $0x4] sm:$0xf] %v259
    $region37: #{tpu_custom_call.1} parent=1 // pred_fallthru
      _
    // Predicated region
    $region38: #{tpu_custom_call.1} parent=1 // pred_check
      _
    $region39: #{tpu_custom_call.1} parent=1 // pred_check_branch
      %265 = sbr.rel (0) target = $region41
    $region40: #{tpu_custom_call.1} parent=1 // pred_region
      %s267 = ssub.s32 128, 128
      %268 = vsyncadd [#allocation5], %s267
      %s269 = sshll.u32 [#allocation9], 4
      %s270 = int_to_ptr.vmem [resolvable:$true] %s269
      %275 = dma.vmem_to_hbm [thread:$0]  %s270, 128, %s4, [#allocation5], 64, 64, 4
    $region41: #{tpu_custom_call.1} parent=1 // pred_fallthru
      _
    // Predicated region
    $region42: #{tpu_custom_call.1} parent=1 // pred_check
      _
    $region43: #{tpu_custom_call.1} parent=1 // pred_check_branch
      %277 = sbr.rel (0) target = $region45
    $region44: #{tpu_custom_call.1} parent=1 // pred_region
      %278 = dma.done [#allocation5], 128
    $region45: #{tpu_custom_call.1} parent=1 // pred_fallthru
      _
    %279 = vsyncpa [#allocation4], 1
    %280 = vsyncpa [#allocation7], 1
    %281 = vsyncpa [#allocation5], 1

</llo_original>
